<compile_context>
chip_gen: v6e
topology: v6e:2x2x1
jax: 0.10.0
libtpu: 0.0.40
codegen_flags: <defaults>
</compile_context>

<pallas_src>
import jax
import jax.numpy as jnp
from jax.experimental import pallas as pl
from jax.experimental.pallas import tpu as pltpu

_LANE = 128      # lane width: pad feature dims to this
_SUBLANE = 8     # sublane width: pad batch tiles to this
_NEG = -1e30     # bias for padded action columns -> softmax weight ~0


def _round_up(x, m):
    return (x + m - 1) // m * m


def _policy_kernel(x_ref, w1_ref, b1_ref, w2_ref, b2_ref, w3_ref, b3_ref, out_ref):
    # x: (TB, in_p) f32 tile of the batch. Weights are bf16, biases f32.
    x = x_ref[...]

    # ---- layer 1: linear -> relu -> tanh(tanh(.)) ----  (bf16 MXU, f32 accumulate)
    h1 = jnp.dot(x.astype(jnp.bfloat16), w1_ref[...],
                 preferred_element_type=jnp.float32) + b1_ref[...]
    h1 = jnp.maximum(h1, 0.0)
    h1 = jnp.tanh(jnp.tanh(h1))

    # ---- layer 2: linear -> relu -> tanh(tanh(.)) ----
    h2 = jnp.dot(h1.astype(jnp.bfloat16), w2_ref[...],
                 preferred_element_type=jnp.float32) + b2_ref[...]
    h2 = jnp.maximum(h2, 0.0)
    h2 = jnp.tanh(jnp.tanh(h2))

    # ---- layer 3: linear -> softmax(dim=-1) ----
    logits = jnp.dot(h2.astype(jnp.bfloat16), w3_ref[...],
                     preferred_element_type=jnp.float32) + b3_ref[...]
    m = jnp.max(logits, axis=-1, keepdims=True)
    e = jnp.exp(logits - m)
    denom = jnp.sum(e, axis=-1, keepdims=True)
    # Exact division: rows sum to 1 within f32 rounding (approx reciprocal was
    # the source of the previous row-sum failure; this divide is negligible).
    out_ref[...] = e / denom


def policy_network_forward(state, params, *, block_b=512):
    """state: (B, num_inputs) f32; params: dict of (in,out) weights and (1,out) biases.

    Returns (B, num_actions) f32 action probabilities (rows sum to ~1).
    """
    w1, b1, w2, b2, w3, b3 = (
        params["w1"], params["b1"], params["w2"], params["b2"], params["w3"], params["b3"]
    )
    B, num_inputs = state.shape
    hidden = w1.shape[1]
    num_actions = w3.shape[1]

    # Lane-dense padded sizes.
    in_p = _round_up(num_inputs, _LANE)
    hid_p = _round_up(hidden, _LANE)
    act_p = _round_up(num_actions, _LANE)

    # Batch tile: as large as requested, always a multiple of the sublane width.
    TB = _round_up(min(block_b, B), _SUBLANE)
    B_p = _round_up(B, TB)

    # Host-side zero padding.  Zero-padded hidden units stay exactly zero through
    # relu/tanh and contribute nothing downstream; padded action columns get a
    # -1e30 bias so softmax assigns them ~0 probability.
    f32, bf16 = jnp.float32, jnp.bfloat16
    state_p = jnp.zeros((B_p, in_p), f32).at[:B, :num_inputs].set(state.astype(f32))
    w1_p = jnp.zeros((in_p, hid_p), bf16).at[:num_inputs, :hidden].set(w1.astype(bf16))
    b1_p = jnp.zeros((1, hid_p), f32).at[:, :hidden].set(b1.astype(f32))
    w2_p = jnp.zeros((hid_p, hid_p), bf16).at[:hidden, :hidden].set(w2.astype(bf16))
    b2_p = jnp.zeros((1, hid_p), f32).at[:, :hidden].set(b2.astype(f32))
    w3_p = jnp.zeros((hid_p, act_p), bf16).at[:hidden, :num_actions].set(w3.astype(bf16))
    b3_p = jnp.full((1, act_p), _NEG, f32).at[:, :num_actions].set(b3.astype(f32))

    grid = (B_p // TB,)

    def resident(shape):
        # Weights / biases: same full block at every grid step -> stay pinned in VMEM.
        return pl.BlockSpec(shape, lambda i: (0, 0))

    out_p = pl.pallas_call(
        _policy_kernel,
        out_shape=jax.ShapeDtypeStruct((B_p, act_p), jnp.float32),
        grid=grid,
        in_specs=[
            pl.BlockSpec((TB, in_p), lambda i: (i, 0)),   # streamed state tiles
            resident((in_p, hid_p)),
            resident((1, hid_p)),
            resident((hid_p, hid_p)),
            resident((1, hid_p)),
            resident((hid_p, act_p)),
            resident((1, act_p)),
        ],
        out_specs=pl.BlockSpec((TB, act_p), lambda i: (i, 0)),
        compiler_params=pltpu.CompilerParams(dimension_semantics=("parallel",)),
    )(state_p, w1_p, b1_p, w2_p, b2_p, w3_p, b3_p)

    return out_p[:B, :num_actions]


def init_params(key, num_inputs, num_actions, hidden_size):
    """Deterministic synthetic init (uniform, PyTorch-Linear-like bounds)."""
    ks = jax.random.split(key, 6)

    def unif(k, shape, fan_in):
        bound = 1.0 / jnp.sqrt(fan_in)
        return jax.random.uniform(k, shape, jnp.float32, -bound, bound)

    return {
        "w1": unif(ks[0], (num_inputs, hidden_size), num_inputs),
        "b1": unif(ks[1], (1, hidden_size), num_inputs),
        "w2": unif(ks[2], (hidden_size, hidden_size), hidden_size),
        "b2": unif(ks[3], (1, hidden_size), hidden_size),
        "w3": unif(ks[4], (hidden_size, num_actions), hidden_size),
        "b3": unif(ks[5], (1, num_actions), hidden_size),
    }


def _reference_forward(state, params):
    """Pure-JAX f32 reference matching the PyTorch module."""
    x = jnp.maximum(state @ params["w1"] + params["b1"], 0.0)
    x = jnp.tanh(jnp.tanh(x))
    x = jnp.maximum(x @ params["w2"] + params["b2"], 0.0)
    x = jnp.tanh(jnp.tanh(x))
    logits = x @ params["w3"] + params["b3"]
    return jax.nn.softmax(logits, axis=-1)


if __name__ == "__main__":
    key = jax.random.PRNGKey(0)
    B, num_inputs, num_actions, hidden_size = 64, 16, 4, 32

    k_state, k_params = jax.random.split(key)
    state = jax.random.normal(k_state, (B, num_inputs), dtype=jnp.float32)
    params = init_params(k_params, num_inputs, num_actions, hidden_size)

    # block_b=32 -> grid=(2,): exercises the batch-tiled, weight-resident path.
    probs = policy_network_forward(state, params, block_b=32)
    jax.block_until_ready(probs)

    assert probs.shape == (B, num_actions)

    # sanity: rows sum to ~1 (exact divide -> f32-rounding-level deviation)
    row_sums = jnp.sum(probs, axis=-1)
    assert bool(jnp.all(jnp.abs(row_sums - 1.0) < 1e-4)), "row sums off"

    # compare against the f32 reference (bf16 matmul operands -> small deviation)
    ref = _reference_forward(state, params)
    assert bool(jnp.max(jnp.abs(probs - ref)) < 5e-2), "mismatch vs reference"

    print("KERNEL_OK")
</pallas_src>

<mosaic_0001>
module attributes {stable_mosaic.version = 11 : i64} {
  func.func @_policy_kernel(%arg0: i32, %arg1: memref<32x128xf32, #tpu.memory_space<vmem>>, %arg2: memref<128x128xbf16, #tpu.memory_space<vmem>>, %arg3: memref<1x128xf32, #tpu.memory_space<vmem>>, %arg4: memref<128x128xbf16, #tpu.memory_space<vmem>>, %arg5: memref<1x128xf32, #tpu.memory_space<vmem>>, %arg6: memref<128x128xbf16, #tpu.memory_space<vmem>>, %arg7: memref<1x128xf32, #tpu.memory_space<vmem>>, %arg8: memref<32x128xf32, #tpu.memory_space<vmem>>) attributes {dimension_semantics = [#tpu.dimension_semantics<parallel>], iteration_bounds = array<i64: 2>, scalar_prefetch = 0 : i64, scratch_operands = 0 : i64, tpu.core_type = #tpu.core_type<tc>, window_params = [{transform_indices = @transform_0, window_bounds = array<i64: 32, 128>}, {pipeline_mode = #tpu.pipeline_mode<synchronous>, transform_indices = @transform_1, window_bounds = array<i64: 128, 128>}, {pipeline_mode = #tpu.pipeline_mode<synchronous>, transform_indices = @transform_2, window_bounds = array<i64: 1, 128>}, {pipeline_mode = #tpu.pipeline_mode<synchronous>, transform_indices = @transform_3, window_bounds = array<i64: 128, 128>}, {pipeline_mode = #tpu.pipeline_mode<synchronous>, transform_indices = @transform_4, window_bounds = array<i64: 1, 128>}, {pipeline_mode = #tpu.pipeline_mode<synchronous>, transform_indices = @transform_5, window_bounds = array<i64: 128, 128>}, {pipeline_mode = #tpu.pipeline_mode<synchronous>, transform_indices = @transform_6, window_bounds = array<i64: 1, 128>}, {transform_indices = @transform_7, window_bounds = array<i64: 32, 128>}]} {
    %c0 = arith.constant 0 : index
    %c0_0 = arith.constant 0 : index
    %0 = vector.load %arg1[%c0, %c0_0] : memref<32x128xf32, #tpu.memory_space<vmem>>, vector<32x128xf32>
    %1 = arith.truncf %0 : vector<32x128xf32> to vector<32x128xbf16>
    %c0_1 = arith.constant 0 : index
    %c0_2 = arith.constant 0 : index
    %2 = vector.load %arg2[%c0_1, %c0_2] : memref<128x128xbf16, #tpu.memory_space<vmem>>, vector<128x128xbf16>
    %cst = arith.constant dense<0.000000e+00> : vector<32x128xf32>
    %3 = tpu.matmul %1, %2, %cst {dimension_numbers = #tpu.dot_dimension_numbers<[1], [0], [0], [1], [0, 0, 1, 1], [], []>} : vector<32x128xbf16>, vector<128x128xbf16>, vector<32x128xf32> -> vector<32x128xf32>
    %c0_3 = arith.constant 0 : index
    %c0_4 = arith.constant 0 : index
    %4 = vector.load %arg3[%c0_3, %c0_4] : memref<1x128xf32, #tpu.memory_space<vmem>>, vector<1x128xf32>
    %5 = vector.broadcast %4 : vector<1x128xf32> to vector<32x128xf32>
    %6 = arith.addf %3, %5 : vector<32x128xf32>
    %cst_5 = arith.constant 0.000000e+00 : f32
    %7 = vector.broadcast %cst_5 : f32 to vector<32x128xf32>
    %8 = arith.maximumf %6, %7 : vector<32x128xf32>
    %9 = math.tanh %8 : vector<32x128xf32>
    %10 = math.tanh %9 : vector<32x128xf32>
    %11 = arith.truncf %10 : vector<32x128xf32> to vector<32x128xbf16>
    %c0_6 = arith.constant 0 : index
    %c0_7 = arith.constant 0 : index
    %12 = vector.load %arg4[%c0_6, %c0_7] : memref<128x128xbf16, #tpu.memory_space<vmem>>, vector<128x128xbf16>
    %cst_8 = arith.constant dense<0.000000e+00> : vector<32x128xf32>
    %13 = tpu.matmul %11, %12, %cst_8 {dimension_numbers = #tpu.dot_dimension_numbers<[1], [0], [0], [1], [0, 0, 1, 1], [], []>} : vector<32x128xbf16>, vector<128x128xbf16>, vector<32x128xf32> -> vector<32x128xf32>
    %c0_9 = arith.constant 0 : index
    %c0_10 = arith.constant 0 : index
    %14 = vector.load %arg5[%c0_9, %c0_10] : memref<1x128xf32, #tpu.memory_space<vmem>>, vector<1x128xf32>
    %15 = vector.broadcast %14 : vector<1x128xf32> to vector<32x128xf32>
    %16 = arith.addf %13, %15 : vector<32x128xf32>
    %cst_11 = arith.constant 0.000000e+00 : f32
    %17 = vector.broadcast %cst_11 : f32 to vector<32x128xf32>
    %18 = arith.maximumf %16, %17 : vector<32x128xf32>
    %19 = math.tanh %18 : vector<32x128xf32>
    %20 = math.tanh %19 : vector<32x128xf32>
    %21 = arith.truncf %20 : vector<32x128xf32> to vector<32x128xbf16>
    %c0_12 = arith.constant 0 : index
    %c0_13 = arith.constant 0 : index
    %22 = vector.load %arg6[%c0_12, %c0_13] : memref<128x128xbf16, #tpu.memory_space<vmem>>, vector<128x128xbf16>
    %cst_14 = arith.constant dense<0.000000e+00> : vector<32x128xf32>
    %23 = tpu.matmul %21, %22, %cst_14 {dimension_numbers = #tpu.dot_dimension_numbers<[1], [0], [0], [1], [0, 0, 1, 1], [], []>} : vector<32x128xbf16>, vector<128x128xbf16>, vector<32x128xf32> -> vector<32x128xf32>
    %c0_15 = arith.constant 0 : index
    %c0_16 = arith.constant 0 : index
    %24 = vector.load %arg7[%c0_15, %c0_16] : memref<1x128xf32, #tpu.memory_space<vmem>>, vector<1x128xf32>
    %25 = vector.broadcast %24 : vector<1x128xf32> to vector<32x128xf32>
    %26 = arith.addf %23, %25 : vector<32x128xf32>
    %cst_17 = arith.constant dense<0xFF800000> : vector<32xf32>
    %27 = vector.multi_reduction <maximumf>, %26, %cst_17 [1] : vector<32x128xf32> to vector<32xf32>
    %28 = vector.shape_cast %27 : vector<32xf32> to vector<32x1xf32>
    %29 = vector.broadcast %28 : vector<32x1xf32> to vector<32x128xf32>
    %30 = arith.subf %26, %29 : vector<32x128xf32>
    %31 = math.exp %30 : vector<32x128xf32>
    %cst_18 = arith.constant dense<0.000000e+00> : vector<32xf32>
    %32 = vector.multi_reduction <add>, %31, %cst_18 [1] : vector<32x128xf32> to vector<32xf32>
    %33 = vector.shape_cast %32 : vector<32xf32> to vector<32x1xf32>
    %34 = vector.broadcast %33 : vector<32x1xf32> to vector<32x128xf32>
    %35 = arith.divf %31, %34 : vector<32x128xf32>
    %c0_19 = arith.constant 0 : index
    %c0_20 = arith.constant 0 : index
    %36 = vector.load %arg8[%c0_19, %c0_20] : memref<32x128xf32, #tpu.memory_space<vmem>>, vector<32x128xf32>
    tpu.vector_store %arg8[%c0_19, %c0_20], %35 {strides = array<i32>} : memref<32x128xf32, #tpu.memory_space<vmem>>, vector<32x128xf32>,
    return
  }
  func.func @transform_0(%arg0: i32) -> (i32, i32) {
    %c0_i32 = arith.constant 0 : i32
    %c0_i32_0 = arith.constant 0 : i32
    return %arg0, %c0_i32 : i32, i32
  }
  func.func @transform_1(%arg0: i32) -> (i32, i32) {
    %c0_i32 = arith.constant 0 : i32
    %c0_i32_0 = arith.constant 0 : i32
    %c0_i32_1 = arith.constant 0 : i32
    return %c0_i32, %c0_i32_0 : i32, i32
  }
  func.func @transform_2(%arg0: i32) -> (i32, i32) {
    %c0_i32 = arith.constant 0 : i32
    %c0_i32_0 = arith.constant 0 : i32
    %c0_i32_1 = arith.constant 0 : i32
    return %c0_i32, %c0_i32_0 : i32, i32
  }
  func.func @transform_3(%arg0: i32) -> (i32, i32) {
    %c0_i32 = arith.constant 0 : i32
    %c0_i32_0 = arith.constant 0 : i32
    %c0_i32_1 = arith.constant 0 : i32
    return %c0_i32, %c0_i32_0 : i32, i32
  }
  func.func @transform_4(%arg0: i32) -> (i32, i32) {
    %c0_i32 = arith.constant 0 : i32
    %c0_i32_0 = arith.constant 0 : i32
    %c0_i32_1 = arith.constant 0 : i32
    return %c0_i32, %c0_i32_0 : i32, i32
  }
  func.func @transform_5(%arg0: i32) -> (i32, i32) {
    %c0_i32 = arith.constant 0 : i32
    %c0_i32_0 = arith.constant 0 : i32
    %c0_i32_1 = arith.constant 0 : i32
    return %c0_i32, %c0_i32_0 : i32, i32
  }
  func.func @transform_6(%arg0: i32) -> (i32, i32) {
    %c0_i32 = arith.constant 0 : i32
    %c0_i32_0 = arith.constant 0 : i32
    %c0_i32_1 = arith.constant 0 : i32
    return %c0_i32, %c0_i32_0 : i32, i32
  }
  func.func @transform_7(%arg0: i32) -> (i32, i32) {
    %c0_i32 = arith.constant 0 : i32
    %c0_i32_0 = arith.constant 0 : i32
    return %arg0, %c0_i32 : i32, i32
  }
}

</mosaic_0001>

<llo_original>
// kernel: tpu_custom_call.1
$region0: #{tpu_custom_call.1}
  #allocation0 [shape = 'u32[]', space=smem, size = 0x4, offset = 0x4, fixed_abs, tag = 'smem constant byte address 0x4 - core index']
  #allocation1 [shape = 'u32[144,128]{1,0:T(1,128)}', space=vmem, size = 0x12000, scoped, tag = 'internal scratch']
  %s0 = inlined_call_operand.hbm [shape: f32[64,128], index: 0, kind: input, shape index: {}]
  %s1 = inlined_call_operand.hbm [shape: bf16[128,128], index: 1, kind: input, shape index: {}]
  %s2 = inlined_call_operand.vmem [shape: f32[1,128], index: 2, kind: input, shape index: {}]
  %s3 = inlined_call_operand.hbm [shape: bf16[128,128], index: 3, kind: input, shape index: {}]
  %s4 = inlined_call_operand.vmem [shape: f32[1,128], index: 4, kind: input, shape index: {}]
  %s5 = inlined_call_operand.hbm [shape: bf16[128,128], index: 5, kind: input, shape index: {}]
  %s6 = inlined_call_operand.vmem [shape: f32[1,128], index: 6, kind: input, shape index: {}]
  %s7 = inlined_call_operand.hbm [shape: f32[64,128], index: 7, kind: output, shape index: {}]
  %s8 = sld [smem:[#allocation0]]
  $region77: #{tpu_custom_call.1} parent=0
    _
  %s10 = ssub.s32 1, %s8
  %s11 = scalar_select 0, %s10, %s8
  $region1: #{tpu_custom_call.1} parent=0
    #allocation2 [shape = 'u8[32768]{0}', space=vmem, size = 0x8000, scoped, tag = 'input window, operand 0']
    #allocation3 [shape = 's32[2]{0}', space=sflag, size = 0x8, scoped, tag = 'scoped memory for tpu_custom_call.1']
    #allocation4 [shape = 's32[2]{0}', space=sflag, size = 0x8, scoped, tag = 'scoped memory for tpu_custom_call.1']
    #allocation5 [shape = 'u8[32768]{0}', space=vmem, size = 0x8000, scoped, tag = 'input window, operand 1, single buffered']
    #allocation6 [shape = 's32[1]{0}', space=sflag, size = 0x4, scoped, tag = 'scoped memory for tpu_custom_call.1']
    #allocation7 [shape = 'u8[32768]{0}', space=vmem, size = 0x8000, scoped, tag = 'input window, operand 3, single buffered']
    #allocation8 [shape = 'u8[32768]{0}', space=vmem, size = 0x8000, scoped, tag = 'input window, operand 5, single buffered']
    #allocation9 [shape = 's32[1]{0}', space=sflag, size = 0x4, scoped, tag = 'scoped memory for tpu_custom_call.1']
    #allocation10 [shape = 'u8[32768]{0}', space=vmem, size = 0x8000, scoped, tag = 'output window, operand 0']
    %12 = vsyncpa [#allocation3], 0
    %s13 = scalar_lea.sflag [#allocation3], 1
    %14 = vsyncpa %s13, 0
    %15 = vsyncpa [#allocation6], 0
    %16 = vsyncpa [#allocation9], 0
    %17 = vsyncpa [#allocation4], 0
    %s18 = scalar_lea.sflag [#allocation4], 1
    %19 = vsyncpa %s18, 0
    loop: start=0, step=1, limit=4
    $region2: #{tpu_custom_call.1} parent=1 // loop_pre_header
      _
    $region3: #{tpu_custom_call.1} parent=1 // loop_header
      %s21 = sphi 0, %s25
      %p22 = scmp.ge.s32.totalorder %s21, 4
      %s31 = sphi 0, %s33
      %s34 = sphi 0, %s31
      %s35 = sphi 0, %s34
      %s51 = sphi 0, %s35
      %s55 = sphi 0, %s55
      %s57 = sphi 0, %s55
      %s58 = sphi 0, %s57
      %s72 = sphi 0, %s58
      %s76 = sphi 0, %s76
      %s78 = sphi 0, %s76
      %s79 = sphi 0, %s78
      %s93 = sphi 0, %s79
      %s97 = sphi 0, %s97
      %s99 = sphi 0, %s97
      %s100 = sphi 0, %s99
      %s114 = sphi 0, %s100
      %s118 = sphi 0, %s118
      %s120 = sphi 0, %s118
      %s121 = sphi 0, %s120
      %s135 = sphi 0, %s121
      %s139 = sphi 0, %s139
      %s141 = sphi 0, %s139
      %s142 = sphi 0, %s141
      %s156 = sphi 0, %s142
      %s160 = sphi 0, %s160
      %s162 = sphi 0, %s160
      %s163 = sphi 0, %s162
      %s177 = sphi 0, %s163
      %s183 = sphi 0, %s185
      %s186 = sphi 0, %s183
      %s187 = sphi 0, %s186
      %s203 = sphi 0, %s187
    $region4: #{tpu_custom_call.1} parent=1 // loop_header_branch
      %24 = sbr.rel (%p22) target = $region8
    $region5: #{tpu_custom_call.1} parent=1 // loop_body
      %s26 = ssub.s32 %s21, 1
      %s27 = ssub.s32 %s21, 2
      %s28 = sadd.s32 %s21, 1
      %s29 = ssub.s32 %s21, %s28
      %p30 = scmp.eq.s32.totalorder %s29, 0
      %s32 = sadd.s32 %s31, 1
      %s33 = scalar_select %p30, %s31, %s32
      %p36 = pneg %p30
      %p37 = scmp.eq.s32.totalorder %s21, 1
      %p38 = por %p36, %p37
      %p39 = scmp.ne.s32.totalorder %s31, %s34
      %p40 = scmp.eq.s32.totalorder %s21, 0
      %p41 = por %p39, %p40
      %p42 = scmp.ne.s32.totalorder %s31, %s34
      %p43 = scmp.eq.s32.totalorder %s26, 1
      %p44 = por %p42, %p43
      %p45 = scmp.ne.s32.totalorder %s34, %s35
      %p46 = scmp.eq.s32.totalorder %s26, 0
      %p47 = por %p45, %p46
      %p48 = scmp.ne.s32.totalorder %s34, %s35
      %p49 = scmp.eq.s32.totalorder %s27, 1
      %p50 = por %p48, %p49
      %p52 = scmp.ne.s32.totalorder %s35, %s51
      %p53 = scmp.eq.s32.totalorder %s27, 0
      %p54 = por %p52, %p53
      %s56 = sadd.s32 %s55, 1
      %p59 = scmp.eq.s32.totalorder %s21, 1
      %p60 = scmp.ne.s32.totalorder %s55, %s57
      %p61 = scmp.eq.s32.totalorder %s21, 0
      %p62 = por %p60, %p61
      %p63 = scmp.ne.s32.totalorder %s55, %s57
      %p64 = scmp.eq.s32.totalorder %s26, 1
      %p65 = por %p63, %p64
      %p66 = scmp.ne.s32.totalorder %s57, %s58
      %p67 = scmp.eq.s32.totalorder %s26, 0
      %p68 = por %p66, %p67
      %p69 = scmp.ne.s32.totalorder %s57, %s58
      %p70 = scmp.eq.s32.totalorder %s27, 1
      %p71 = por %p69, %p70
      %p73 = scmp.ne.s32.totalorder %s58, %s72
      %p74 = scmp.eq.s32.totalorder %s27, 0
      %p75 = por %p73, %p74
      %s77 = sadd.s32 %s76, 1
      %p80 = scmp.eq.s32.totalorder %s21, 1
      %p81 = scmp.ne.s32.totalorder %s76, %s78
      %p82 = scmp.eq.s32.totalorder %s21, 0
      %p83 = por %p81, %p82
      %p84 = scmp.ne.s32.totalorder %s76, %s78
      %p85 = scmp.eq.s32.totalorder %s26, 1
      %p86 = por %p84, %p85
      %p87 = scmp.ne.s32.totalorder %s78, %s79
      %p88 = scmp.eq.s32.totalorder %s26, 0
      %p89 = por %p87, %p88
      %p90 = scmp.ne.s32.totalorder %s78, %s79
      %p91 = scmp.eq.s32.totalorder %s27, 1
      %p92 = por %p90, %p91
      %p94 = scmp.ne.s32.totalorder %s79, %s93
      %p95 = scmp.eq.s32.totalorder %s27, 0
      %p96 = por %p94, %p95
      %s98 = sadd.s32 %s97, 1
      %p101 = scmp.eq.s32.totalorder %s21, 1
      %p102 = scmp.ne.s32.totalorder %s97, %s99
      %p103 = scmp.eq.s32.totalorder %s21, 0
      %p104 = por %p102, %p103
      %p105 = scmp.ne.s32.totalorder %s97, %s99
      %p106 = scmp.eq.s32.totalorder %s26, 1
      %p107 = por %p105, %p106
      %p108 = scmp.ne.s32.totalorder %s99, %s100
      %p109 = scmp.eq.s32.totalorder %s26, 0
      %p110 = por %p108, %p109
      %p111 = scmp.ne.s32.totalorder %s99, %s100
      %p112 = scmp.eq.s32.totalorder %s27, 1
      %p113 = por %p111, %p112
      %p115 = scmp.ne.s32.totalorder %s100, %s114
      %p116 = scmp.eq.s32.totalorder %s27, 0
      %p117 = por %p115, %p116
      %s119 = sadd.s32 %s118, 1
      %p122 = scmp.eq.s32.totalorder %s21, 1
      %p123 = scmp.ne.s32.totalorder %s118, %s120
      %p124 = scmp.eq.s32.totalorder %s21, 0
      %p125 = por %p123, %p124
      %p126 = scmp.ne.s32.totalorder %s118, %s120
      %p127 = scmp.eq.s32.totalorder %s26, 1
      %p128 = por %p126, %p127
      %p129 = scmp.ne.s32.totalorder %s120, %s121
      %p130 = scmp.eq.s32.totalorder %s26, 0
      %p131 = por %p129, %p130
      %p132 = scmp.ne.s32.totalorder %s120, %s121
      %p133 = scmp.eq.s32.totalorder %s27, 1
      %p134 = por %p132, %p133
      %p136 = scmp.ne.s32.totalorder %s121, %s135
      %p137 = scmp.eq.s32.totalorder %s27, 0
      %p138 = por %p136, %p137
      %s140 = sadd.s32 %s139, 1
      %p143 = scmp.eq.s32.totalorder %s21, 1
      %p144 = scmp.ne.s32.totalorder %s139, %s141
      %p145 = scmp.eq.s32.totalorder %s21, 0
      %p146 = por %p144, %p145
      %p147 = scmp.ne.s32.totalorder %s139, %s141
      %p148 = scmp.eq.s32.totalorder %s26, 1
      %p149 = por %p147, %p148
      %p150 = scmp.ne.s32.totalorder %s141, %s142
      %p151 = scmp.eq.s32.totalorder %s26, 0
      %p152 = por %p150, %p151
      %p153 = scmp.ne.s32.totalorder %s141, %s142
      %p154 = scmp.eq.s32.totalorder %s27, 1
      %p155 = por %p153, %p154
      %p157 = scmp.ne.s32.totalorder %s142, %s156
      %p158 = scmp.eq.s32.totalorder %s27, 0
      %p159 = por %p157, %p158
      %s161 = sadd.s32 %s160, 1
      %p164 = scmp.eq.s32.totalorder %s21, 1
      %p165 = scmp.ne.s32.totalorder %s160, %s162
      %p166 = scmp.eq.s32.totalorder %s21, 0
      %p167 = por %p165, %p166
      %p168 = scmp.ne.s32.totalorder %s160, %s162
      %p169 = scmp.eq.s32.totalorder %s26, 1
      %p170 = por %p168, %p169
      %p171 = scmp.ne.s32.totalorder %s162, %s163
      %p172 = scmp.eq.s32.totalorder %s26, 0
      %p173 = por %p171, %p172
      %p174 = scmp.ne.s32.totalorder %s162, %s163
      %p175 = scmp.eq.s32.totalorder %s27, 1
      %p176 = por %p174, %p175
      %p178 = scmp.ne.s32.totalorder %s163, %s177
      %p179 = scmp.eq.s32.totalorder %s27, 0
      %p180 = por %p178, %p179
      %s181 = ssub.s32 %s21, %s28
      %p182 = scmp.eq.s32.totalorder %s181, 0
      %s184 = sadd.s32 %s183, 1
      %s185 = scalar_select %p182, %s183, %s184
      %p188 = pneg %p182
      %p189 = scmp.eq.s32.totalorder %s21, 1
      %p190 = por %p188, %p189
      %p191 = scmp.ne.s32.totalorder %s183, %s186
      %p192 = scmp.eq.s32.totalorder %s21, 0
      %p193 = por %p191, %p192
      %p194 = scmp.ne.s32.totalorder %s183, %s186
      %p195 = scmp.eq.s32.totalorder %s26, 1
      %p196 = por %p194, %p195
      %p197 = scmp.ne.s32.totalorder %s186, %s187
      %p198 = scmp.eq.s32.totalorder %s26, 0
      %p199 = por %p197, %p198
      %p200 = scmp.ne.s32.totalorder %s186, %s187
      %p201 = scmp.eq.s32.totalorder %s27, 1
      %p202 = por %p200, %p201
      %p204 = scmp.ne.s32.totalorder %s187, %s203
      %p205 = scmp.eq.s32.totalorder %s27, 0
      %p206 = por %p204, %p205
      %p207 = scmp.le.s32.totalorder 1, %s21
      %p208 = scmp.lt.s32.totalorder %s21, 3
      %p209 = pnand %p207, %p208
      %p210 = pneg %p209
      // Predicated region
      $region9: #{tpu_custom_call.1} parent=5 // pred_check
        _
      $region10: #{tpu_custom_call.1} parent=5 // pred_check_branch
        %212 = sbr.rel (%p209) target = $region12
      $region11: #{tpu_custom_call.1} parent=5 // pred_region
        %s213 = ssub.s32 %s21, 1
        // Predicated region
        $region13: #{tpu_custom_call.1} parent=11 // pred_check
          %p214 = pneg %p68
        $region14: #{tpu_custom_call.1} parent=11 // pred_check_branch
          %216 = sbr.rel (%p214) target = $region16
        $region15: #{tpu_custom_call.1} parent=11 // pred_region
          %s218 = ssub.s32 1024, 1024
          %219 = vsyncadd [#allocation6], %s218
          %s220 = sshll.u32 [#allocation5], 4
          %s221 = int_to_ptr.vmem [resolvable:$true] %s220
          %226 = dma.hbm_to_vmem [thread:$0]  %s1, 1024, %s221, [#allocation6], 64, 64, 4
        $region16: #{tpu_custom_call.1} parent=11 // pred_fallthru
          _
        // Predicated region
        $region17: #{tpu_custom_call.1} parent=11 // pred_check
          %p227 = pneg %p89
        $region18: #{tpu_custom_call.1} parent=11 // pred_check_branch
          %229 = sbr.rel (%p227) target = $region20
        $region19: #{tpu_custom_call.1} parent=11 // pred_region
          _
        $region20: #{tpu_custom_call.1} parent=11 // pred_fallthru
          _
        // Predicated region
        $region21: #{tpu_custom_call.1} parent=11 // pred_check
          %p230 = pneg %p110
        $region22: #{tpu_custom_call.1} parent=11 // pred_check_branch
          %232 = sbr.rel (%p230) target = $region24
        $region23: #{tpu_custom_call.1} parent=11 // pred_region
          %s234 = ssub.s32 1024, 1024
          %235 = vsyncadd [#allocation6], %s234
          %s236 = sshll.u32 [#allocation7], 4
          %s237 = int_to_ptr.vmem [resolvable:$true] %s236
          %242 = dma.hbm_to_vmem [thread:$0]  %s3, 1024, %s237, [#allocation6], 64, 64, 4
        $region24: #{tpu_custom_call.1} parent=11 // pred_fallthru
          _
        // Predicated region
        $region25: #{tpu_custom_call.1} parent=11 // pred_check
          %p243 = pneg %p131
        $region26: #{tpu_custom_call.1} parent=11 // pred_check_branch
          %245 = sbr.rel (%p243) target = $region28
        $region27: #{tpu_custom_call.1} parent=11 // pred_region
          _
        $region28: #{tpu_custom_call.1} parent=11 // pred_fallthru
          _
        // Predicated region
        $region29: #{tpu_custom_call.1} parent=11 // pred_check
          %p246 = pneg %p152
        $region30: #{tpu_custom_call.1} parent=11 // pred_check_branch
          %248 = sbr.rel (%p246) target = $region32
        $region31: #{tpu_custom_call.1} parent=11 // pred_region
          %s250 = ssub.s32 1024, 1024
          %251 = vsyncadd [#allocation9], %s250
          %s252 = sshll.u32 [#allocation8], 4
          %s253 = int_to_ptr.vmem [resolvable:$true] %s252
          %258 = dma.hbm_to_vmem [thread:$0]  %s5, 1024, %s253, [#allocation9], 64, 64, 4
        $region32: #{tpu_custom_call.1} parent=11 // pred_fallthru
          _
        // Predicated region
        $region33: #{tpu_custom_call.1} parent=11 // pred_check
          %p259 = pneg %p173
        $region34: #{tpu_custom_call.1} parent=11 // pred_check_branch
          %261 = sbr.rel (%p259) target = $region36
        $region35: #{tpu_custom_call.1} parent=11 // pred_region
          _
        $region36: #{tpu_custom_call.1} parent=11 // pred_fallthru
          _
      $region12: #{tpu_custom_call.1} parent=5 // pred_fallthru
        _
      %p262 = scmp.lt.s32.totalorder %s21, 2
      // Predicated region
      $region37: #{tpu_custom_call.1} parent=5 // pred_check
        %p263 = pneg %p262
      $region38: #{tpu_custom_call.1} parent=5 // pred_check_branch
        %265 = sbr.rel (%p263) target = $region40
      $region39: #{tpu_custom_call.1} parent=5 // pred_region
        // Predicated region
        $region41: #{tpu_custom_call.1} parent=39 // pred_check
          %p266 = pneg %p41
        $region42: #{tpu_custom_call.1} parent=39 // pred_check_branch
          %268 = sbr.rel (%p266) target = $region44
        $region43: #{tpu_custom_call.1} parent=39 // pred_region
          %s269 = sand.u32 %s31, 1
          %s270 = scalar_lea.sflag [#allocation3], %s269
          %s271 = sand.u32 %s31, 1
          %s272 = smul.addr %s271, 32
          %s273 = scalar_lea.vmem [#allocation2], %s272
          %s274 = smul.u32 4, %s21
          %s276 = ssub.s32 512, 512
          %277 = vsyncadd %s270, %s276
          %s278 = smul.addr %s274, 128
          %s279 = scalar_lea.hbm %s0, %s278
          %s280 = sshll.u32 %s273, 4
          %s281 = int_to_ptr.vmem [resolvable:$true] %s280
          %286 = dma.hbm_to_vmem [thread:$0]  %s279, 512, %s281, %s270, 128, 128, 8
        $region44: #{tpu_custom_call.1} parent=39 // pred_fallthru
          _
      $region40: #{tpu_custom_call.1} parent=5 // pred_fallthru
        _
      %p287 = scmp.le.s32.totalorder 1, %s21
      %p288 = scmp.lt.s32.totalorder %s21, 3
      %p289 = pnand %p287, %p288
      %p290 = pneg %p289
      // Predicated region
      $region45: #{tpu_custom_call.1} parent=5 // pred_check
        _
      $region46: #{tpu_custom_call.1} parent=5 // pred_check_branch
        %292 = sbr.rel (%p289) target = $region48
      $region47: #{tpu_custom_call.1} parent=5 // pred_region
        %s293 = ssub.s32 %s21, 1
        %s294 = sand.u32 %s34, 1
        %s295 = scalar_lea.sflag [#allocation3], %s294
        %s296 = sand.u32 %s34, 1
        %s297 = smul.addr %s296, 32
        %s298 = scalar_lea.vmem [#allocation2], %s297
        // Predicated region
        $region49: #{tpu_custom_call.1} parent=47 // pred_check
          %p299 = pneg %p47
        $region50: #{tpu_custom_call.1} parent=47 // pred_check_branch
          %301 = sbr.rel (%p299) target = $region52
        $region51: #{tpu_custom_call.1} parent=47 // pred_region
          %302 = dma.done %s295, 512
        $region52: #{tpu_custom_call.1} parent=47 // pred_fallthru
          _
        // Predicated region
        $region53: #{tpu_custom_call.1} parent=47 // pred_check
          %p303 = pneg %p68
        $region54: #{tpu_custom_call.1} parent=47 // pred_check_branch
          %305 = sbr.rel (%p303) target = $region56
        $region55: #{tpu_custom_call.1} parent=47 // pred_region
          %306 = dma.done [#allocation6], 1024
        $region56: #{tpu_custom_call.1} parent=47 // pred_fallthru
          _
        // Predicated region
        $region57: #{tpu_custom_call.1} parent=47 // pred_check
          %p307 = pneg %p110
        $region58: #{tpu_custom_call.1} parent=47 // pred_check_branch
          %309 = sbr.rel (%p307) target = $region60
        $region59: #{tpu_custom_call.1} parent=47 // pred_region
          %310 = dma.done [#allocation6], 1024
        $region60: #{tpu_custom_call.1} parent=47 // pred_fallthru
          _
        // Predicated region
        $region61: #{tpu_custom_call.1} parent=47 // pred_check
          %p311 = pneg %p152
        $region62: #{tpu_custom_call.1} parent=47 // pred_check_branch
          %313 = sbr.rel (%p311) target = $region64
        $region63: #{tpu_custom_call.1} parent=47 // pred_region
          %314 = dma.done [#allocation9], 1024
        $region64: #{tpu_custom_call.1} parent=47 // pred_fallthru
          _
        %s315 = sand.u32 %s34, 1
        %s316 = scalar_lea.sflag [#allocation3], %s315
        %s317 = sand.u32 %s34, 1
        %s318 = smul.addr %s317, 32
        %s319 = scalar_lea.vmem [#allocation2], %s318
        %p320 = pneg %p47
        %p321 = pneg %p44
        %p322 = pneg %p68
        %p323 = pneg %p65
        %p324 = pneg %p89
        %p325 = pneg %p86
        %p326 = pneg %p110
        %p327 = pneg %p107
        %p328 = pneg %p131
        %p329 = pneg %p128
        %p330 = pneg %p152
        %p331 = pneg %p149
        %p332 = pneg %p173
        %p333 = pneg %p170
        %p334 = pneg %p199
        %p335 = pneg %p196
        %s336 = sand.u32 %s186, 1
        %s337 = scalar_lea.sflag [#allocation4], %s336
        %s338 = sand.u32 %s186, 1
        %s339 = smul.addr %s338, 32
        %s340 = scalar_lea.vmem [#allocation10], %s339
        %s341 = smul.u32 4, %s26
        %s342 = smul.u32 4, %s26
        %v344 = vld [vmem:[%s298] sm:$0xff]
        %v345 = vld [vmem:[%s298 + $0x8] sm:$0xff]
        %v346 = vld [vmem:[%s298 + $0x10] sm:$0xff]
        %v347 = vld [vmem:[%s298 + $0x18] sm:$0xff]
        %v348 = vpack.c.bf16 %v345, %v344
        %v349 = vpack.c.bf16 %v347, %v346
        %v350 = vld [vmem:[#allocation5] sm:$0xf]
        %v351 = vld [vmem:[#allocation5 + $0x4] sm:$0xf]
        %v352 = vld [vmem:[#allocation5 + $0x8] sm:$0xf]
        %v353 = vld [vmem:[#allocation5 + $0xc] sm:$0xf]
        %v354 = vld [vmem:[#allocation5 + $0x10] sm:$0xf]
        %v355 = vld [vmem:[#allocation5 + $0x14] sm:$0xf]
        %v356 = vld [vmem:[#allocation5 + $0x18] sm:$0xf]
        %v357 = vld [vmem:[#allocation5 + $0x1c] sm:$0xf]
        %v358 = vld [vmem:[#allocation5 + $0x20] sm:$0xf]
        %v359 = vld [vmem:[#allocation5 + $0x24] sm:$0xf]
        %v360 = vld [vmem:[#allocation5 + $0x28] sm:$0xf]
        %v361 = vld [vmem:[#allocation5 + $0x2c] sm:$0xf]
        %v362 = vld [vmem:[#allocation5 + $0x30] sm:$0xf]
        %v363 = vld [vmem:[#allocation5 + $0x34] sm:$0xf]
        %v364 = vld [vmem:[#allocation5 + $0x38] sm:$0xf]
        %v365 = vld [vmem:[#allocation5 + $0x3c] sm:$0xf]
        %v366 = vld [vmem:[%s2] sm:$0x1]
        %v368 = vlaneseq
        %v369 = vshrl.u32 %v368, 7
        %v370 = vsub.s32 0, %v369
        %v371 = vrot.slane %v366, %v370
        %v389 = vunpack.c.l.b16 %v350
        %v390 = vunpack.c.l.b16 %v351
        %v391 = vunpack.c.l.b16 %v352
        %v392 = vunpack.c.l.b16 %v353
        %v393 = vunpack.c.l.b16 %v354
        %v394 = vunpack.c.l.b16 %v355
        %v395 = vunpack.c.l.b16 %v356
        %v396 = vunpack.c.l.b16 %v357
        %v397 = vunpack.c.l.b16 %v358
        %v398 = vunpack.c.l.b16 %v359
        %v399 = vunpack.c.l.b16 %v360
        %v400 = vunpack.c.l.b16 %v361
        %v401 = vunpack.c.l.b16 %v362
        %v402 = vunpack.c.l.b16 %v363
        %v403 = vunpack.c.l.b16 %v364
        %v404 = vunpack.c.l.b16 %v365
        %v405 = vpack.c.b16 %v390, %v389
        %v406 = vpack.c.b16 %v392, %v391
        %v407 = vpack.c.b16 %v394, %v393
        %v408 = vpack.c.b16 %v396, %v395
        %v409 = vpack.c.b16 %v398, %v397
        %v410 = vpack.c.b16 %v400, %v399
        %v411 = vpack.c.b16 %v402, %v401
        %v412 = vpack.c.b16 %v404, %v403
        %421 = vmatprep.subr.bf16.mxu0 0
        %422 = vmatpush1.bf16.msra.mxu0 %v412
        %423 = vmatprep.subr.bf16.mxu0 0
        %424 = vmatpush1.bf16.msra.mxu0 %v411
        %425 = vmatprep.subr.bf16.mxu0 0
        %426 = vmatpush1.bf16.msra.mxu0 %v410
        %427 = vmatprep.subr.bf16.mxu0 0
        %428 = vmatpush1.bf16.msra.mxu0 %v409
        %429 = vmatprep.subr.bf16.mxu0 0
        %430 = vmatpush1.bf16.msra.mxu0 %v408
        %431 = vmatprep.subr.bf16.mxu0 0
        %432 = vmatpush1.bf16.msra.mxu0 %v407
        %433 = vmatprep.subr.bf16.mxu0 0
        %434 = vmatpush1.bf16.msra.mxu0 %v406
        %435 = vmatprep.subr.bf16.mxu0 0
        %436 = vmatpush1.bf16.msra.mxu0 %v405
        %437 = vmatprep.subr.bf16.mxu0 0
        %438 = vmatpush2.bf16.msra.mxu0 0
        %439 = vmatprep.subr.bf16.mxu0 0
        %440 = vmatpush2.bf16.msra.mxu0 0
        %441 = vmatprep.subr.bf16.mxu0 0
        %442 = vmatpush2.bf16.msra.mxu0 0
        %443 = vmatprep.subr.bf16.mxu0 0
        %444 = vmatpush2.bf16.msra.mxu0 0
        %445 = vmatprep.subr.bf16.mxu0 0
        %446 = vmatpush2.bf16.msra.mxu0 0
        %447 = vmatprep.subr.bf16.mxu0 0
        %448 = vmatpush2.bf16.msra.mxu0 0
        %449 = vmatprep.subr.bf16.mxu0 0
        %450 = vmatpush2.bf16.msra.mxu0 0
        %451 = vmatprep.subr.bf16.mxu0 0
        %452 = vmatpush2.bf16.msra.mxu0 0
        %453 = vmatprep.mubr.bf16.mxu0 0
        %454 = vmatmul.mubr.bf16.gmra.mxu0 %v348
        %v455 = vpop.f32.mrf.mxu0
        %v456 = vadd.f32 %v371, %v455
        %v457 = vpop.f32.mrf.mxu0
        %v458 = vpop.f32.mrf.mxu0
        %v459 = vadd.f32 %v371, %v458
        %v460 = vpop.f32.mrf.mxu0
        %461 = vmatprep.mubr.bf16.mxu0 0
        %462 = vmatmul.mubr.bf16.gmra.mxu0 %v349
        %v463 = vpop.f32.mrf.mxu0
        %v464 = vadd.f32 %v371, %v463
        %v465 = vpop.f32.mrf.mxu0
        %v466 = vpop.f32.mrf.mxu0
        %v467 = vadd.f32 %v371, %v466
        %v468 = vpop.f32.mrf.mxu0
        %469 = vdwg.mxu0
        %v470 = vmax.f32 %v456, 0.0
        %v471 = vmax.f32 %v459, 0.0
        %v472 = vmax.f32 %v464, 0.0
        %v473 = vmax.f32 %v467, 0.0
        %v474 = vtanh.pop %v470
        %v475 = vtanh.pop %v471
        %v476 = vtanh.pop %v472
        %v477 = vtanh.pop %v473
        %v478 = vtanh.pop %v474
        %v479 = vtanh.pop %v475
        %v480 = vtanh.pop %v476
        %v481 = vtanh.pop %v477
        %v482 = vpack.c.bf16 %v479, %v478
        %v483 = vpack.c.bf16 %v481, %v480
        %v484 = vld [vmem:[#allocation7] sm:$0xf]
        %v485 = vld [vmem:[#allocation7 + $0x4] sm:$0xf]
        %v486 = vld [vmem:[#allocation7 + $0x8] sm:$0xf]
        %v487 = vld [vmem:[#allocation7 + $0xc] sm:$0xf]
        %v488 = vld [vmem:[#allocation7 + $0x10] sm:$0xf]
        %v489 = vld [vmem:[#allocation7 + $0x14] sm:$0xf]
        %v490 = vld [vmem:[#allocation7 + $0x18] sm:$0xf]
        %v491 = vld [vmem:[#allocation7 + $0x1c] sm:$0xf]
        %v492 = vld [vmem:[#allocation7 + $0x20] sm:$0xf]
        %v493 = vld [vmem:[#allocation7 + $0x24] sm:$0xf]
        %v494 = vld [vmem:[#allocation7 + $0x28] sm:$0xf]
        %v495 = vld [vmem:[#allocation7 + $0x2c] sm:$0xf]
        %v496 = vld [vmem:[#allocation7 + $0x30] sm:$0xf]
        %v497 = vld [vmem:[#allocation7 + $0x34] sm:$0xf]
        %v498 = vld [vmem:[#allocation7 + $0x38] sm:$0xf]
        %v499 = vld [vmem:[#allocation7 + $0x3c] sm:$0xf]
        %v500 = vld [vmem:[%s4] sm:$0x1]
        %v502 = vlaneseq
        %v503 = vshrl.u32 %v502, 7
        %v504 = vsub.s32 0, %v503
        %v505 = vrot.slane %v500, %v504
        %v523 = vunpack.c.l.b16 %v484
        %v524 = vunpack.c.l.b16 %v485
        %v525 = vunpack.c.l.b16 %v486
        %v526 = vunpack.c.l.b16 %v487
        %v527 = vunpack.c.l.b16 %v488
        %v528 = vunpack.c.l.b16 %v489
        %v529 = vunpack.c.l.b16 %v490
        %v530 = vunpack.c.l.b16 %v491
        %v531 = vunpack.c.l.b16 %v492
        %v532 = vunpack.c.l.b16 %v493
        %v533 = vunpack.c.l.b16 %v494
        %v534 = vunpack.c.l.b16 %v495
        %v535 = vunpack.c.l.b16 %v496
        %v536 = vunpack.c.l.b16 %v497
        %v537 = vunpack.c.l.b16 %v498
        %v538 = vunpack.c.l.b16 %v499
        %v539 = vpack.c.b16 %v524, %v523
        %v540 = vpack.c.b16 %v526, %v525
        %v541 = vpack.c.b16 %v528, %v527
        %v542 = vpack.c.b16 %v530, %v529
        %v543 = vpack.c.b16 %v532, %v531
        %v544 = vpack.c.b16 %v534, %v533
        %v545 = vpack.c.b16 %v536, %v535
        %v546 = vpack.c.b16 %v538, %v537
        %555 = vmatprep.subr.bf16.mxu0 0
        %556 = vmatpush1.bf16.msra.mxu0 %v546
        %557 = vmatprep.subr.bf16.mxu0 0
        %558 = vmatpush1.bf16.msra.mxu0 %v545
        %559 = vmatprep.subr.bf16.mxu0 0
        %560 = vmatpush1.bf16.msra.mxu0 %v544
        %561 = vmatprep.subr.bf16.mxu0 0
        %562 = vmatpush1.bf16.msra.mxu0 %v543
        %563 = vmatprep.subr.bf16.mxu0 0
        %564 = vmatpush1.bf16.msra.mxu0 %v542
        %565 = vmatprep.subr.bf16.mxu0 0
        %566 = vmatpush1.bf16.msra.mxu0 %v541
        %567 = vmatprep.subr.bf16.mxu0 0
        %568 = vmatpush1.bf16.msra.mxu0 %v540
        %569 = vmatprep.subr.bf16.mxu0 0
        %570 = vmatpush1.bf16.msra.mxu0 %v539
        %571 = vmatprep.subr.bf16.mxu0 0
        %572 = vmatpush2.bf16.msra.mxu0 0
        %573 = vmatprep.subr.bf16.mxu0 0
        %574 = vmatpush2.bf16.msra.mxu0 0
        %575 = vmatprep.subr.bf16.mxu0 0
        %576 = vmatpush2.bf16.msra.mxu0 0
        %577 = vmatprep.subr.bf16.mxu0 0
        %578 = vmatpush2.bf16.msra.mxu0 0
        %579 = vmatprep.subr.bf16.mxu0 0
        %580 = vmatpush2.bf16.msra.mxu0 0
        %581 = vmatprep.subr.bf16.mxu0 0
        %582 = vmatpush2.bf16.msra.mxu0 0
        %583 = vmatprep.subr.bf16.mxu0 0
        %584 = vmatpush2.bf16.msra.mxu0 0
        %585 = vmatprep.subr.bf16.mxu0 0
        %586 = vmatpush2.bf16.msra.mxu0 0
        %587 = vmatprep.mubr.bf16.mxu0 0
        %588 = vmatmul.mubr.bf16.gmra.mxu0 %v482
        %v589 = vpop.f32.mrf.mxu0
        %v590 = vadd.f32 %v505, %v589
        %v591 = vpop.f32.mrf.mxu0
        %v592 = vpop.f32.mrf.mxu0
        %v593 = vadd.f32 %v505, %v592
        %v594 = vpop.f32.mrf.mxu0
        %595 = vmatprep.mubr.bf16.mxu0 0
        %596 = vmatmul.mubr.bf16.gmra.mxu0 %v483
        %v597 = vpop.f32.mrf.mxu0
        %v598 = vadd.f32 %v505, %v597
        %v599 = vpop.f32.mrf.mxu0
        %v600 = vpop.f32.mrf.mxu0
        %v601 = vadd.f32 %v505, %v600
        %v602 = vpop.f32.mrf.mxu0
        %603 = vdwg.mxu0
        %v604 = vmax.f32 %v590, 0.0
        %v605 = vmax.f32 %v593, 0.0
        %v606 = vmax.f32 %v598, 0.0
        %v607 = vmax.f32 %v601, 0.0
        %v608 = vtanh.pop %v604
        %v609 = vtanh.pop %v605
        %v610 = vtanh.pop %v606
        %v611 = vtanh.pop %v607
        %v612 = vtanh.pop %v608
        %v613 = vtanh.pop %v609
        %v614 = vtanh.pop %v610
        %v615 = vtanh.pop %v611
        %v616 = vpack.c.bf16 %v613, %v612
        %v617 = vpack.c.bf16 %v615, %v614
        %v618 = vld [vmem:[#allocation8] sm:$0xf]
        %v619 = vld [vmem:[#allocation8 + $0x4] sm:$0xf]
        %v620 = vld [vmem:[#allocation8 + $0x8] sm:$0xf]
        %v621 = vld [vmem:[#allocation8 + $0xc] sm:$0xf]
        %v622 = vld [vmem:[#allocation8 + $0x10] sm:$0xf]
        %v623 = vld [vmem:[#allocation8 + $0x14] sm:$0xf]
        %v624 = vld [vmem:[#allocation8 + $0x18] sm:$0xf]
        %v625 = vld [vmem:[#allocation8 + $0x1c] sm:$0xf]
        %v626 = vld [vmem:[#allocation8 + $0x20] sm:$0xf]
        %v627 = vld [vmem:[#allocation8 + $0x24] sm:$0xf]
        %v628 = vld [vmem:[#allocation8 + $0x28] sm:$0xf]
        %v629 = vld [vmem:[#allocation8 + $0x2c] sm:$0xf]
        %v630 = vld [vmem:[#allocation8 + $0x30] sm:$0xf]
        %v631 = vld [vmem:[#allocation8 + $0x34] sm:$0xf]
        %v632 = vld [vmem:[#allocation8 + $0x38] sm:$0xf]
        %v633 = vld [vmem:[#allocation8 + $0x3c] sm:$0xf]
        %v634 = vld [vmem:[%s6] sm:$0x1]
        %v636 = vlaneseq
        %v637 = vshrl.u32 %v636, 7
        %v638 = vsub.s32 0, %v637
        %v639 = vrot.slane %v634, %v638
        %v657 = vunpack.c.l.b16 %v618
        %v658 = vunpack.c.l.b16 %v619
        %v659 = vunpack.c.l.b16 %v620
        %v660 = vunpack.c.l.b16 %v621
        %v661 = vunpack.c.l.b16 %v622
        %v662 = vunpack.c.l.b16 %v623
        %v663 = vunpack.c.l.b16 %v624
        %v664 = vunpack.c.l.b16 %v625
        %v665 = vunpack.c.l.b16 %v626
        %v666 = vunpack.c.l.b16 %v627
        %v667 = vunpack.c.l.b16 %v628
        %v668 = vunpack.c.l.b16 %v629
        %v669 = vunpack.c.l.b16 %v630
        %v670 = vunpack.c.l.b16 %v631
        %v671 = vunpack.c.l.b16 %v632
        %v672 = vunpack.c.l.b16 %v633
        %v673 = vpack.c.b16 %v658, %v657
        %v674 = vpack.c.b16 %v660, %v659
        %v675 = vpack.c.b16 %v662, %v661
        %v676 = vpack.c.b16 %v664, %v663
        %v677 = vpack.c.b16 %v666, %v665
        %v678 = vpack.c.b16 %v668, %v667
        %v679 = vpack.c.b16 %v670, %v669
        %v680 = vpack.c.b16 %v672, %v671
        %689 = vmatprep.subr.bf16.mxu0 0
        %690 = vmatpush1.bf16.msra.mxu0 %v680
        %691 = vmatprep.subr.bf16.mxu0 0
        %692 = vmatpush1.bf16.msra.mxu0 %v679
        %693 = vmatprep.subr.bf16.mxu0 0
        %694 = vmatpush1.bf16.msra.mxu0 %v678
        %695 = vmatprep.subr.bf16.mxu0 0
        %696 = vmatpush1.bf16.msra.mxu0 %v677
        %697 = vmatprep.subr.bf16.mxu0 0
        %698 = vmatpush1.bf16.msra.mxu0 %v676
        %699 = vmatprep.subr.bf16.mxu0 0
        %700 = vmatpush1.bf16.msra.mxu0 %v675
        %701 = vmatprep.subr.bf16.mxu0 0
        %702 = vmatpush1.bf16.msra.mxu0 %v674
        %703 = vmatprep.subr.bf16.mxu0 0
        %704 = vmatpush1.bf16.msra.mxu0 %v673
        %705 = vmatprep.subr.bf16.mxu0 0
        %706 = vmatpush2.bf16.msra.mxu0 0
        %707 = vmatprep.subr.bf16.mxu0 0
        %708 = vmatpush2.bf16.msra.mxu0 0
        %709 = vmatprep.subr.bf16.mxu0 0
        %710 = vmatpush2.bf16.msra.mxu0 0
        %711 = vmatprep.subr.bf16.mxu0 0
        %712 = vmatpush2.bf16.msra.mxu0 0
        %713 = vmatprep.subr.bf16.mxu0 0
        %714 = vmatpush2.bf16.msra.mxu0 0
        %715 = vmatprep.subr.bf16.mxu0 0
        %716 = vmatpush2.bf16.msra.mxu0 0
        %717 = vmatprep.subr.bf16.mxu0 0
        %718 = vmatpush2.bf16.msra.mxu0 0
        %719 = vmatprep.subr.bf16.mxu0 0
        %720 = vmatpush2.bf16.msra.mxu0 0
        %721 = vmatprep.mubr.bf16.mxu0 0
        %722 = vmatmul.mubr.bf16.gmra.mxu0 %v616
        %v723 = vpop.f32.mrf.mxu0
        %v724 = vadd.f32 %v639, %v723
        %v725 = vpop.f32.mrf.mxu0
        %v726 = vpop.f32.mrf.mxu0
        %v727 = vadd.f32 %v639, %v726
        %v728 = vpop.f32.mrf.mxu0
        %729 = vmatprep.mubr.bf16.mxu0 0
        %730 = vmatmul.mubr.bf16.gmra.mxu0 %v617
        %v731 = vpop.f32.mrf.mxu0
        %v732 = vadd.f32 %v639, %v731
        %v733 = vpop.f32.mrf.mxu0
        %v734 = vpop.f32.mrf.mxu0
        %v735 = vadd.f32 %v639, %v734
        %v736 = vpop.f32.mrf.mxu0
        %737 = vdwg.mxu0
        %738 = vmax.xlane.f32.xlu0 %v724
        %v739 = vpop.xlane.xlu0 %738
        %740 = vmax.xlane.f32.xlu0 %v727
        %v741 = vpop.xlane.xlu0 %740
        %742 = vmax.xlane.f32.xlu0 %v732
        %v743 = vpop.xlane.xlu0 %742
        %744 = vmax.xlane.f32.xlu0 %v735
        %v745 = vpop.xlane.xlu0 %744
        %v746 = vsub.f32 %v724, %v739
        %v747 = vsub.f32 %v727, %v741
        %v748 = vsub.f32 %v732, %v743
        %v749 = vsub.f32 %v735, %v745
        %v750 = vmul.f32 %v746, 1.442695
        %v751 = vpow.pop %v750
        %v752 = vmul.f32 %v747, 1.442695
        %v753 = vpow.pop %v752
        %v754 = vmul.f32 %v748, 1.442695
        %v755 = vpow.pop %v754
        %v756 = vmul.f32 %v749, 1.442695
        %v757 = vpow.pop %v756
        %758 = vadd.xlane.f32.xlu0 %v751
        %v759 = vpop.xlane.xlu0 %758
        %760 = vadd.xlane.f32.xlu0 %v753
        %v761 = vpop.xlane.xlu0 %760
        %762 = vadd.xlane.f32.xlu0 %v755
        %v763 = vpop.xlane.xlu0 %762
        %764 = vadd.xlane.f32.xlu0 %v757
        %v765 = vpop.xlane.xlu0 %764
        %v766 = vrcp.pop %v759
        %v767 = vmul.f32 %v751, %v766
        %v768 = vrcp.pop %v761
        %v769 = vmul.f32 %v753, %v768
        %v770 = vrcp.pop %v763
        %v771 = vmul.f32 %v755, %v770
        %v772 = vrcp.pop %v765
        %v773 = vmul.f32 %v757, %v772
        %774 = vst [vmem:[%s340] sm:$0xff] %v767
        %775 = vst [vmem:[%s340 + $0x8] sm:$0xff] %v769
        %776 = vst [vmem:[%s340 + $0x10] sm:$0xff] %v771
        %777 = vst [vmem:[%s340 + $0x18] sm:$0xff] %v773
        %s778 = sand.u32 %s186, 1
        %s779 = scalar_lea.sflag [#allocation4], %s778
        %s780 = sand.u32 %s186, 1
        %s781 = smul.addr %s780, 32
        %s782 = scalar_lea.vmem [#allocation10], %s781
        // Predicated region
        $region65: #{tpu_custom_call.1} parent=47 // pred_check
          %p783 = pneg %p196
        $region66: #{tpu_custom_call.1} parent=47 // pred_check_branch
          %785 = sbr.rel (%p783) target = $region68
        $region67: #{tpu_custom_call.1} parent=47 // pred_region
          %s786 = smul.u32 4, %s26
          %s788 = ssub.s32 512, 512
          %789 = vsyncadd %s779, %s788
          %s790 = smul.addr %s786, 128
          %s791 = scalar_lea.hbm %s7, %s790
          %s792 = sshll.u32 %s782, 4
          %s793 = int_to_ptr.vmem [resolvable:$true] %s792
          %798 = dma.vmem_to_hbm [thread:$0]  %s793, 512, %s791, %s779, 128, 128, 8
        $region68: #{tpu_custom_call.1} parent=47 // pred_fallthru
          _
      $region48: #{tpu_custom_call.1} parent=5 // pred_fallthru
        _
      %p799 = scmp.le.s32.totalorder 2, %s21
      // Predicated region
      $region69: #{tpu_custom_call.1} parent=5 // pred_check
        %p800 = pneg %p799
      $region70: #{tpu_custom_call.1} parent=5 // pred_check_branch
        %802 = sbr.rel (%p800) target = $region72
      $region71: #{tpu_custom_call.1} parent=5 // pred_region
        %s803 = ssub.s32 %s21, 2
        // Predicated region
        $region73: #{tpu_custom_call.1} parent=71 // pred_check
          %p804 = pneg %p202
        $region74: #{tpu_custom_call.1} parent=71 // pred_check_branch
          %806 = sbr.rel (%p804) target = $region76
        $region75: #{tpu_custom_call.1} parent=71 // pred_region
          %s807 = sand.u32 %s187, 1
          %s808 = scalar_lea.sflag [#allocation4], %s807
          %s809 = sand.u32 %s187, 1
          %s810 = smul.addr %s809, 32
          %s811 = scalar_lea.vmem [#allocation10], %s810
          %812 = dma.done %s808, 512
        $region76: #{tpu_custom_call.1} parent=71 // pred_fallthru
          _
      $region72: #{tpu_custom_call.1} parent=5 // pred_fallthru
        _
    $region6: #{tpu_custom_call.1} parent=1 // loop_footer
      %s25 = sadd.s32 1, %s21
    $region7: #{tpu_custom_call.1} parent=1 // loop_footer_branch
      %20 = sbr.rel target = $region3
    $region8: #{tpu_custom_call.1} parent=1 // loop_exit
      _
    %813 = vsyncpa [#allocation3], 1
    %s814 = scalar_lea.sflag [#allocation3], 1
    %815 = vsyncpa %s814, 1
    %816 = vsyncpa [#allocation6], 1
    %817 = vsyncpa [#allocation9], 1
    %818 = vsyncpa [#allocation4], 1
    %s819 = scalar_lea.sflag [#allocation4], 1
    %820 = vsyncpa %s819, 1

</llo_original>
